<compile_context>
chip_gen: v6e
topology: v6e:2x2x1
jax: 0.10.0
libtpu: 0.0.40
codegen_flags: <defaults>
</compile_context>

<pallas_src>
import functools

import jax
import jax.numpy as jnp
from jax.experimental import pallas as pl
from jax.experimental.pallas import tpu as pltpu


def _channel_attention_kernel(x_ref, w1_ref, w2t_ref, out_ref,
                              sum_sc, max_sc, *, hw_total, hid):
    # x_ref:   (n_blk, C, hw_blk)  native dtype -- spatial axis on lanes
    # w1_ref:  (hid, C) f32        fc1.weight in PyTorch (out_ch, in_ch) layout
    # w2t_ref: (hid, C) f32        fc2.weight transposed once in the wrapper
    # out_ref: (n_blk, 1, C) f32   sigmoid(channel attention)
    # sum_sc / max_sc: (n_blk, C) f32 accumulators across the HW grid axis
    j = pl.program_id(1)

    @pl.when(j == 0)
    def _():
        sum_sc[...] = jnp.zeros_like(sum_sc)
        max_sc[...] = jnp.full_like(max_sc, -jnp.inf)

    # One streamed pass over the block: cast to f32 (mean accumulation stays
    # f32 even for bf16 inputs), then a single sum + running-max lane reduce.
    xb = x_ref[...].astype(jnp.float32)
    sum_sc[...] += jnp.sum(xb, axis=-1)
    max_sc[...] = jnp.maximum(max_sc[...], jnp.max(xb, axis=-1))

    @pl.when(j == pl.num_programs(1) - 1)
    def _():
        w1 = w1_ref[...]                        # hoisted, loaded once
        w2t = w2t_ref[...]
        avg = sum_sc[...] * (1.0 / hw_total)    # (n_blk, C)
        mx = max_sc[...]                        # (n_blk, C)

        def shared_mlp(v):
            if hid <= 8:
                # Tiny bottleneck: VPU broadcast-mul + lane-reduce, no padded
                # (C, hid) MXU tile, static unroll over hid.
                acc = jnp.zeros_like(v)
                for h in range(hid):
                    a = jnp.sum(v * w1[h:h + 1, :], axis=-1, keepdims=True)
                    acc = acc + jnp.maximum(a, 0.0) * w2t[h:h + 1, :]
                return acc
            # Larger hid: two MXU matmuls; contract on C without an explicit
            # transpose of w1 (dot_general picks the contraction axis).
            hmid = jax.lax.dot_general(
                v, w1, dimension_numbers=(((1,), (1,)), ((), ())),
                preferred_element_type=jnp.float32)
            hmid = jnp.maximum(hmid, 0.0)
            return jnp.dot(hmid, w2t, preferred_element_type=jnp.float32)

        att = jax.nn.sigmoid(shared_mlp(avg) + shared_mlp(mx))   # (n_blk, C)
        out_ref[...] = att[:, None, :].astype(out_ref.dtype)


def _largest_divisor_leq(n, cap):
    cap = max(1, min(n, cap))
    for d in range(cap, 0, -1):
        if n % d == 0:
            return d
    return 1


def channel_attention_forward(x_nchw, fc1_weight, fc2_weight):
    """ChannelAttention forward.

    x_nchw:     (N, C, H, W)         input (f32 or bf16; streamed as-is).
    fc1_weight: (C//16, C, 1, 1)     nn.Conv2d(C, C//16, 1, bias=False).weight
    fc2_weight: (C, C//16, 1, 1)     nn.Conv2d(C//16, C, 1, bias=False).weight
    Returns:    (N, C, 1, 1) f32     sigmoid attention map (same as the module).
    """
    n, c, h, w = x_nchw.shape
    hw = h * w
    hid = fc1_weight.shape[0]

    x3 = x_nchw.reshape(n, c, hw)                            # free reshape, no upcast
    w1 = fc1_weight.reshape(hid, c).astype(jnp.float32)      # native (out, in)
    w2t = fc2_weight.reshape(c, hid).T.astype(jnp.float32)   # (hid, C), tiny

    itemsize = x3.dtype.itemsize
    # Keep each streamed x block <= ~2 MiB so double-buffered inputs fit the
    # smallest scoped-VMEM defaults (v5e 16 MiB) and v7x's 64 MiB physical VMEM.
    target_bytes = 2 * 1024 * 1024

    # Split the HW (reduction) axis only if a 128-aligned divisor exists;
    # otherwise keep it whole (lane dim must be a multiple of 128 or full).
    hw_blk = hw
    if c * hw * itemsize > target_bytes:
        cand = (target_bytes // (c * itemsize)) // 128 * 128
        while cand >= 128 and hw % cand != 0:
            cand -= 128
        if cand >= 128:
            hw_blk = cand
    # Batch blocking: largest divisor of N that keeps the block under target.
    n_blk = _largest_divisor_leq(n, max(1, target_bytes // (c * hw_blk * itemsize)))

    grid = (n // n_blk, hw // hw_blk)
    kernel = functools.partial(_channel_attention_kernel, hw_total=hw, hid=hid)

    att = pl.pallas_call(
        kernel,
        out_shape=jax.ShapeDtypeStruct((n, 1, c), jnp.float32),
        grid_spec=pltpu.PrefetchScalarGridSpec(
            num_scalar_prefetch=0,
            grid=grid,
            in_specs=[
                pl.BlockSpec((n_blk, c, hw_blk), lambda i, j: (i, 0, j)),
                pl.BlockSpec((hid, c), lambda i, j: (0, 0)),
                pl.BlockSpec((hid, c), lambda i, j: (0, 0)),
            ],
            out_specs=pl.BlockSpec((n_blk, 1, c), lambda i, j: (i, 0, 0)),
            scratch_shapes=[pltpu.VMEM((n_blk, c), jnp.float32),
                            pltpu.VMEM((n_blk, c), jnp.float32)],
        ),
        compiler_params=pltpu.CompilerParams(
            dimension_semantics=("parallel", "arbitrary")),
        cost_estimate=pl.CostEstimate(
            flops=2 * n * c * hw + 8 * n * c * hid,
            transcendentals=n * c,
            bytes_accessed=n * c * hw * itemsize + 2 * hid * c * 4 + n * c * 4),
    )(x3, w1, w2t)
    return att.reshape(n, c, 1, 1)


if __name__ == "__main__":
    # C must be >= 16 so the in_planes // 16 bottleneck is non-degenerate.
    N, C, H, W = 2, 32, 16, 16

    key = jax.random.PRNGKey(0)
    kx, k1, k2 = jax.random.split(key, 3)
    x = jax.random.normal(kx, (N, C, H, W), jnp.float32)
    fc1_w = jax.random.normal(k1, (C // 16, C, 1, 1), jnp.float32) * 0.1
    fc2_w = jax.random.normal(k2, (C, C // 16, 1, 1), jnp.float32) * 0.1

    out = jax.block_until_ready(channel_attention_forward(x, fc1_w, fc2_w))
    assert out.shape == (N, C, 1, 1)

    # Pure-JAX reference (same math as the PyTorch module).
    def reference(x, w1, w2):
        w1 = w1.reshape(C // 16, C)
        w2 = w2.reshape(C, C // 16)
        avg = jnp.mean(x, axis=(2, 3))              # AdaptiveAvgPool2d(1)
        mx = jnp.max(x, axis=(2, 3))                # AdaptiveMaxPool2d(1)

        def mlp(v):
            return jnp.maximum(v @ w1.T, 0.0) @ w2.T

        return jax.nn.sigmoid(mlp(avg) + mlp(mx)).reshape(N, C, 1, 1)

    expected = reference(x, fc1_w, fc2_w)
    assert jnp.allclose(out, expected, rtol=1e-4, atol=1e-5), float(
        jnp.max(jnp.abs(out - expected)))

    print("KERNEL_OK")
</pallas_src>

<mosaic_0001>
module attributes {stable_mosaic.version = 11 : i64} {
  func.func @_channel_attention_kernel(%arg0: i32, %arg1: i32, %arg2: memref<2x32x256xf32, #tpu.memory_space<vmem>>, %arg3: memref<2x32xf32, #tpu.memory_space<vmem>>, %arg4: memref<2x32xf32, #tpu.memory_space<vmem>>, %arg5: memref<2x1x32xf32, #tpu.memory_space<vmem>>, %arg6: memref<2x32xf32, #tpu.memory_space<vmem>>, %arg7: memref<2x32xf32, #tpu.memory_space<vmem>>) attributes {dimension_semantics = [#tpu.dimension_semantics<parallel>, #tpu.dimension_semantics<arbitrary>], iteration_bounds = array<i64: 1, 1>, scalar_prefetch = 0 : i64, scratch_operands = 2 : i64, tpu.core_type = #tpu.core_type<tc>, window_params = [{transform_indices = @transform_0, window_bounds = array<i64: 2, 32, 256>}, {pipeline_mode = #tpu.pipeline_mode<synchronous>, transform_indices = @transform_1, window_bounds = array<i64: 2, 32>}, {pipeline_mode = #tpu.pipeline_mode<synchronous>, transform_indices = @transform_2, window_bounds = array<i64: 2, 32>}, {transform_indices = @transform_3, window_bounds = array<i64: 2, 1, 32>}]} {
    %c0_i32 = arith.constant 0 : i32
    %0 = arith.cmpi eq, %arg1, %c0_i32 : i32
    %1 = arith.extui %0 : i1 to i32
    %c0_i32_0 = arith.constant 0 : i32
    %2 = arith.cmpi ne, %1, %c0_i32_0 : i32
    scf.if %2 {
      %cst_14 = arith.constant 0.000000e+00 : f32
      %15 = vector.broadcast %cst_14 : f32 to vector<2x32xf32>
      %c0_15 = arith.constant 0 : index
      %c0_16 = arith.constant 0 : index
      %16 = vector.load %arg6[%c0_15, %c0_16] : memref<2x32xf32, #tpu.memory_space<vmem>>, vector<2x32xf32>
      tpu.vector_store %arg6[%c0_15, %c0_16], %15 {strides = array<i32>} : memref<2x32xf32, #tpu.memory_space<vmem>>, vector<2x32xf32>,
      %cst_17 = arith.constant 0xFF800000 : f32
      %17 = vector.broadcast %cst_17 : f32 to vector<2x32xf32>
      %c0_18 = arith.constant 0 : index
      %c0_19 = arith.constant 0 : index
      %18 = vector.load %arg7[%c0_18, %c0_19] : memref<2x32xf32, #tpu.memory_space<vmem>>, vector<2x32xf32>
      tpu.vector_store %arg7[%c0_18, %c0_19], %17 {strides = array<i32>} : memref<2x32xf32, #tpu.memory_space<vmem>>, vector<2x32xf32>,
    } else {
    }
    %c0 = arith.constant 0 : index
    %c0_1 = arith.constant 0 : index
    %c0_2 = arith.constant 0 : index
    %3 = vector.load %arg2[%c0, %c0_1, %c0_2] : memref<2x32x256xf32, #tpu.memory_space<vmem>>, vector<2x32x256xf32>
    %c0_3 = arith.constant 0 : index
    %c0_4 = arith.constant 0 : index
    %4 = vector.load %arg6[%c0_3, %c0_4] : memref<2x32xf32, #tpu.memory_space<vmem>>, vector<2x32xf32>
    %cst = arith.constant dense<0.000000e+00> : vector<2x32xf32>
    %5 = vector.multi_reduction <add>, %3, %cst [2] : vector<2x32x256xf32> to vector<2x32xf32>
    %6 = arith.addf %4, %5 : vector<2x32xf32>
    %c0_5 = arith.constant 0 : index
    %c0_6 = arith.constant 0 : index
    %7 = vector.load %arg6[%c0_5, %c0_6] : memref<2x32xf32, #tpu.memory_space<vmem>>, vector<2x32xf32>
    tpu.vector_store %arg6[%c0_5, %c0_6], %6 {strides = array<i32>} : memref<2x32xf32, #tpu.memory_space<vmem>>, vector<2x32xf32>,
    %c0_7 = arith.constant 0 : index
    %c0_8 = arith.constant 0 : index
    %8 = vector.load %arg7[%c0_7, %c0_8] : memref<2x32xf32, #tpu.memory_space<vmem>>, vector<2x32xf32>
    %cst_9 = arith.constant dense<0xFF800000> : vector<2x32xf32>
    %9 = vector.multi_reduction <maximumf>, %3, %cst_9 [2] : vector<2x32x256xf32> to vector<2x32xf32>
    %10 = arith.maximumf %8, %9 : vector<2x32xf32>
    %c0_10 = arith.constant 0 : index
    %c0_11 = arith.constant 0 : index
    %11 = vector.load %arg7[%c0_10, %c0_11] : memref<2x32xf32, #tpu.memory_space<vmem>>, vector<2x32xf32>
    tpu.vector_store %arg7[%c0_10, %c0_11], %10 {strides = array<i32>} : memref<2x32xf32, #tpu.memory_space<vmem>>, vector<2x32xf32>,
    %c0_i32_12 = arith.constant 0 : i32
    %12 = arith.cmpi eq, %arg1, %c0_i32_12 : i32
    %13 = arith.extui %12 : i1 to i32
    %c0_i32_13 = arith.constant 0 : i32
    %14 = arith.cmpi ne, %13, %c0_i32_13 : i32
    scf.if %14 {
      %c0_14 = arith.constant 0 : index
      %c0_15 = arith.constant 0 : index
      %15 = vector.load %arg3[%c0_14, %c0_15] : memref<2x32xf32, #tpu.memory_space<vmem>>, vector<2x32xf32>
      %c0_16 = arith.constant 0 : index
      %c0_17 = arith.constant 0 : index
      %16 = vector.load %arg4[%c0_16, %c0_17] : memref<2x32xf32, #tpu.memory_space<vmem>>, vector<2x32xf32>
      %c0_18 = arith.constant 0 : index
      %c0_19 = arith.constant 0 : index
      %17 = vector.load %arg6[%c0_18, %c0_19] : memref<2x32xf32, #tpu.memory_space<vmem>>, vector<2x32xf32>
      %cst_20 = arith.constant 3.906250e-03 : f32
      %18 = vector.broadcast %cst_20 : f32 to vector<2x32xf32>
      %19 = arith.mulf %17, %18 : vector<2x32xf32>
      %c0_21 = arith.constant 0 : index
      %c0_22 = arith.constant 0 : index
      %20 = vector.load %arg7[%c0_21, %c0_22] : memref<2x32xf32, #tpu.memory_space<vmem>>, vector<2x32xf32>
      %cst_23 = arith.constant 0.000000e+00 : f32
      %21 = vector.broadcast %cst_23 : f32 to vector<2x32xf32>
      %22 = vector.extract_strided_slice %15 {offsets = [0, 0], sizes = [1, 32], strides = [1, 1]} : vector<2x32xf32> to vector<1x32xf32>
      %23 = vector.broadcast %22 : vector<1x32xf32> to vector<2x32xf32>
      %24 = arith.mulf %19, %23 : vector<2x32xf32>
      %cst_24 = arith.constant dense<0.000000e+00> : vector<2xf32>
      %25 = vector.multi_reduction <add>, %24, %cst_24 [1] : vector<2x32xf32> to vector<2xf32>
      %26 = vector.shape_cast %25 : vector<2xf32> to vector<2x1xf32>
      %cst_25 = arith.constant 0.000000e+00 : f32
      %27 = vector.broadcast %cst_25 : f32 to vector<2x1xf32>
      %28 = arith.maximumf %26, %27 : vector<2x1xf32>
      %29 = vector.extract_strided_slice %16 {offsets = [0, 0], sizes = [1, 32], strides = [1, 1]} : vector<2x32xf32> to vector<1x32xf32>
      %30 = vector.broadcast %28 : vector<2x1xf32> to vector<2x32xf32>
      %31 = vector.broadcast %29 : vector<1x32xf32> to vector<2x32xf32>
      %32 = arith.mulf %30, %31 : vector<2x32xf32>
      %33 = arith.addf %21, %32 : vector<2x32xf32>
      %34 = vector.extract_strided_slice %15 {offsets = [1, 0], sizes = [1, 32], strides = [1, 1]} : vector<2x32xf32> to vector<1x32xf32>
      %35 = vector.broadcast %34 : vector<1x32xf32> to vector<2x32xf32>
      %36 = arith.mulf %19, %35 : vector<2x32xf32>
      %cst_26 = arith.constant dense<0.000000e+00> : vector<2xf32>
      %37 = vector.multi_reduction <add>, %36, %cst_26 [1] : vector<2x32xf32> to vector<2xf32>
      %38 = vector.shape_cast %37 : vector<2xf32> to vector<2x1xf32>
      %cst_27 = arith.constant 0.000000e+00 : f32
      %39 = vector.broadcast %cst_27 : f32 to vector<2x1xf32>
      %40 = arith.maximumf %38, %39 : vector<2x1xf32>
      %41 = vector.extract_strided_slice %16 {offsets = [1, 0], sizes = [1, 32], strides = [1, 1]} : vector<2x32xf32> to vector<1x32xf32>
      %42 = vector.broadcast %40 : vector<2x1xf32> to vector<2x32xf32>
      %43 = vector.broadcast %41 : vector<1x32xf32> to vector<2x32xf32>
      %44 = arith.mulf %42, %43 : vector<2x32xf32>
      %45 = arith.addf %33, %44 : vector<2x32xf32>
      %cst_28 = arith.constant 0.000000e+00 : f32
      %46 = vector.broadcast %cst_28 : f32 to vector<2x32xf32>
      %47 = vector.extract_strided_slice %15 {offsets = [0, 0], sizes = [1, 32], strides = [1, 1]} : vector<2x32xf32> to vector<1x32xf32>
      %48 = vector.broadcast %47 : vector<1x32xf32> to vector<2x32xf32>
      %49 = arith.mulf %20, %48 : vector<2x32xf32>
      %cst_29 = arith.constant dense<0.000000e+00> : vector<2xf32>
      %50 = vector.multi_reduction <add>, %49, %cst_29 [1] : vector<2x32xf32> to vector<2xf32>
      %51 = vector.shape_cast %50 : vector<2xf32> to vector<2x1xf32>
      %cst_30 = arith.constant 0.000000e+00 : f32
      %52 = vector.broadcast %cst_30 : f32 to vector<2x1xf32>
      %53 = arith.maximumf %51, %52 : vector<2x1xf32>
      %54 = vector.extract_strided_slice %16 {offsets = [0, 0], sizes = [1, 32], strides = [1, 1]} : vector<2x32xf32> to vector<1x32xf32>
      %55 = vector.broadcast %53 : vector<2x1xf32> to vector<2x32xf32>
      %56 = vector.broadcast %54 : vector<1x32xf32> to vector<2x32xf32>
      %57 = arith.mulf %55, %56 : vector<2x32xf32>
      %58 = arith.addf %46, %57 : vector<2x32xf32>
      %59 = vector.extract_strided_slice %15 {offsets = [1, 0], sizes = [1, 32], strides = [1, 1]} : vector<2x32xf32> to vector<1x32xf32>
      %60 = vector.broadcast %59 : vector<1x32xf32> to vector<2x32xf32>
      %61 = arith.mulf %20, %60 : vector<2x32xf32>
      %cst_31 = arith.constant dense<0.000000e+00> : vector<2xf32>
      %62 = vector.multi_reduction <add>, %61, %cst_31 [1] : vector<2x32xf32> to vector<2xf32>
      %63 = vector.shape_cast %62 : vector<2xf32> to vector<2x1xf32>
      %cst_32 = arith.constant 0.000000e+00 : f32
      %64 = vector.broadcast %cst_32 : f32 to vector<2x1xf32>
      %65 = arith.maximumf %63, %64 : vector<2x1xf32>
      %66 = vector.extract_strided_slice %16 {offsets = [1, 0], sizes = [1, 32], strides = [1, 1]} : vector<2x32xf32> to vector<1x32xf32>
      %67 = vector.broadcast %65 : vector<2x1xf32> to vector<2x32xf32>
      %68 = vector.broadcast %66 : vector<1x32xf32> to vector<2x32xf32>
      %69 = arith.mulf %67, %68 : vector<2x32xf32>
      %70 = arith.addf %58, %69 : vector<2x32xf32>
      %71 = arith.addf %45, %70 : vector<2x32xf32>
      %72 = arith.negf %71 : vector<2x32xf32>
      %73 = math.exp %72 : vector<2x32xf32>
      %cst_33 = arith.constant 1.000000e+00 : f32
      %74 = vector.broadcast %cst_33 : f32 to vector<2x32xf32>
      %75 = arith.addf %74, %73 : vector<2x32xf32>
      %76 = arith.divf %74, %75 : vector<2x32xf32>
      %77 = vector.shape_cast %76 : vector<2x32xf32> to vector<2x1x32xf32>
      %c0_34 = arith.constant 0 : index
      %c0_35 = arith.constant 0 : index
      %c0_36 = arith.constant 0 : index
      %78 = vector.load %arg5[%c0_34, %c0_35, %c0_36] : memref<2x1x32xf32, #tpu.memory_space<vmem>>, vector<2x1x32xf32>
      tpu.vector_store %arg5[%c0_34, %c0_35, %c0_36], %77 {strides = array<i32>} : memref<2x1x32xf32, #tpu.memory_space<vmem>>, vector<2x1x32xf32>,
    } else {
    }
    return
  }
  func.func @transform_0(%arg0: i32, %arg1: i32) -> (i32, i32, i32) {
    %c0_i32 = arith.constant 0 : i32
    %c0_i32_0 = arith.constant 0 : i32
    return %arg0, %c0_i32, %arg1 : i32, i32, i32
  }
  func.func @transform_1(%arg0: i32, %arg1: i32) -> (i32, i32) {
    %c0_i32 = arith.constant 0 : i32
    %c0_i32_0 = arith.constant 0 : i32
    %c0_i32_1 = arith.constant 0 : i32
    return %c0_i32, %c0_i32_0 : i32, i32
  }
  func.func @transform_2(%arg0: i32, %arg1: i32) -> (i32, i32) {
    %c0_i32 = arith.constant 0 : i32
    %c0_i32_0 = arith.constant 0 : i32
    %c0_i32_1 = arith.constant 0 : i32
    return %c0_i32, %c0_i32_0 : i32, i32
  }
  func.func @transform_3(%arg0: i32, %arg1: i32) -> (i32, i32, i32) {
    %c0_i32 = arith.constant 0 : i32
    %c0_i32_0 = arith.constant 0 : i32
    %c0_i32_1 = arith.constant 0 : i32
    return %arg0, %c0_i32, %c0_i32_0 : i32, i32, i32
  }
}

</mosaic_0001>

<llo_original>
// kernel: tpu_custom_call.1
$region0: #{tpu_custom_call.1}
  #allocation0 [shape = 'u32[]', space=smem, size = 0x4, offset = 0x4, fixed_abs, tag = 'smem constant byte address 0x4 - core index']
  #allocation1 [shape = 'u32[144,128]{1,0:T(1,128)}', space=vmem, size = 0x12000, scoped, tag = 'internal scratch']
  #allocation2 [shape = 'f32[2,32]{1,0:T(2,128)}', space=vmem, size = 0x400, scoped, tag = 'scratch operand']
  #allocation3 [shape = 'f32[2,32]{1,0:T(2,128)}', space=vmem, size = 0x400, scoped, tag = 'scratch operand']
  %s0 = inlined_call_operand.hbm [shape: f32[2,32,256], index: 0, kind: input, shape index: {}]
  %s1 = inlined_call_operand.hbm [shape: f32[2,32], index: 1, kind: input, shape index: {}]
  %s2 = inlined_call_operand.vmem [shape: f32[2,32], index: 2, kind: input, shape index: {}]
  %s3 = inlined_call_operand.hbm [shape: f32[2,1,32], index: 3, kind: output, shape index: {}]
  %s4 = sld [smem:[#allocation0]]
  $region38: #{tpu_custom_call.1} parent=0
    _
  %s6 = ssub.s32 1, %s4
  %s7 = scalar_select 0, %s6, %s4
  $region1: #{tpu_custom_call.1} parent=0
    #allocation4 [shape = 'u8[65536]{0}', space=vmem, size = 0x10000, scoped, tag = 'input window, operand 0, single buffered']
    #allocation5 [shape = 's32[1]{0}', space=sflag, size = 0x4, scoped, tag = 'scoped memory for tpu_custom_call.1']
    #allocation6 [shape = 's32[1]{0}', space=sflag, size = 0x4, scoped, tag = 'scoped memory for tpu_custom_call.1']
    #allocation7 [shape = 'u8[1024]{0}', space=vmem, size = 0x400, scoped, tag = 'input window, operand 1, single buffered']
    #allocation8 [shape = 's32[1]{0}', space=sflag, size = 0x4, scoped, tag = 'scoped memory for tpu_custom_call.1']
    #allocation9 [shape = 'u8[1024]{0}', space=vmem, size = 0x400, scoped, tag = 'output window, operand 0, single buffered']
    %8 = vsyncpa [#allocation5], 0
    %9 = vsyncpa [#allocation8], 0
    %10 = vsyncpa [#allocation6], 0
    // Predicated region
    $region2: #{tpu_custom_call.1} parent=1 // pred_check
      _
    $region3: #{tpu_custom_call.1} parent=1 // pred_check_branch
      %12 = sbr.rel (0) target = $region5
    $region4: #{tpu_custom_call.1} parent=1 // pred_region
      %s14 = ssub.s32 2048, 2048
      %15 = vsyncadd [#allocation5], %s14
      %s16 = sshll.u32 [#allocation4], 4
      %s17 = int_to_ptr.vmem [resolvable:$true] %s16
      %22 = dma.hbm_to_vmem [thread:$0]  %s0, 2048, %s17, [#allocation5], 256, 256, 16
    $region5: #{tpu_custom_call.1} parent=1 // pred_fallthru
      _
    // Predicated region
    $region6: #{tpu_custom_call.1} parent=1 // pred_check
      _
    $region7: #{tpu_custom_call.1} parent=1 // pred_check_branch
      %24 = sbr.rel (0) target = $region9
    $region8: #{tpu_custom_call.1} parent=1 // pred_region
      %s26 = ssub.s32 32, 32
      %27 = vsyncadd [#allocation8], %s26
      %s29 = sshll.u32 [#allocation7], 4
      %s30 = int_to_ptr.vmem [resolvable:$true] %s29
      %32 = dma.hbm_to_vmem [thread:$0]  %s1, 32, %s30, [#allocation8]
    $region9: #{tpu_custom_call.1} parent=1 // pred_fallthru
      _
    // Predicated region
    $region10: #{tpu_custom_call.1} parent=1 // pred_check
      _
    $region11: #{tpu_custom_call.1} parent=1 // pred_check_branch
      %34 = sbr.rel (0) target = $region13
    $region12: #{tpu_custom_call.1} parent=1 // pred_region
      _
    $region13: #{tpu_custom_call.1} parent=1 // pred_fallthru
      _
    // Predicated region
    $region14: #{tpu_custom_call.1} parent=1 // pred_check
      _
    $region15: #{tpu_custom_call.1} parent=1 // pred_check_branch
      %36 = sbr.rel (0) target = $region17
    $region16: #{tpu_custom_call.1} parent=1 // pred_region
      %37 = dma.done [#allocation5], 2048
    $region17: #{tpu_custom_call.1} parent=1 // pred_fallthru
      _
    // Predicated region
    $region18: #{tpu_custom_call.1} parent=1 // pred_check
      _
    $region19: #{tpu_custom_call.1} parent=1 // pred_check_branch
      %39 = sbr.rel (0) target = $region21
    $region20: #{tpu_custom_call.1} parent=1 // pred_region
      %40 = dma.done [#allocation8], 32
    $region21: #{tpu_custom_call.1} parent=1 // pred_fallthru
      _
    %p41 = scmp.eq.s32.totalorder 0, 0
    // Predicated region
    $region22: #{tpu_custom_call.1} parent=1 // pred_check
      %p42 = pneg %p41
    $region23: #{tpu_custom_call.1} parent=1 // pred_check_branch
      %44 = sbr.rel (%p42) target = $region25
    $region24: #{tpu_custom_call.1} parent=1 // pred_region
      %vm45 = vcmask 254976
      %46 = vst.msk [vmem:[#allocation2] sm:$0x3] %vm45, 0.0
      %47 = vst.msk [vmem:[#allocation3] sm:$0x3] %vm45, -inf
    $region25: #{tpu_custom_call.1} parent=1 // pred_fallthru
      _
    %v48 = vld [vmem:[#allocation4] sm:$0xff]
    %v49 = vld [vmem:[#allocation4 + $0x8] sm:$0xff]
    %v50 = vld [vmem:[#allocation4 + $0x10] sm:$0xff]
    %v51 = vld [vmem:[#allocation4 + $0x18] sm:$0xff]
    %v52 = vld [vmem:[#allocation4 + $0x20] sm:$0xff]
    %v53 = vld [vmem:[#allocation4 + $0x28] sm:$0xff]
    %v54 = vld [vmem:[#allocation4 + $0x30] sm:$0xff]
    %v55 = vld [vmem:[#allocation4 + $0x38] sm:$0xff]
    %v56 = vld [vmem:[#allocation4 + $0x40] sm:$0xff]
    %v57 = vld [vmem:[#allocation4 + $0x48] sm:$0xff]
    %v58 = vld [vmem:[#allocation4 + $0x50] sm:$0xff]
    %v59 = vld [vmem:[#allocation4 + $0x58] sm:$0xff]
    %v60 = vld [vmem:[#allocation4 + $0x60] sm:$0xff]
    %v61 = vld [vmem:[#allocation4 + $0x68] sm:$0xff]
    %v62 = vld [vmem:[#allocation4 + $0x70] sm:$0xff]
    %v63 = vld [vmem:[#allocation4 + $0x78] sm:$0xff]
    %v64 = vld [vmem:[#allocation2] sm:$0x3]
    %v65 = vadd.f32 %v48, %v49
    %66 = vadd.xlane.f32.xlu0 %v65
    %v67 = vpop.xlane.xlu0 %66
    %v68 = vadd.f32 %v50, %v51
    %69 = vadd.xlane.f32.xlu0 %v68
    %v70 = vpop.xlane.xlu0 %69
    %v71 = vadd.f32 %v52, %v53
    %72 = vadd.xlane.f32.xlu0 %v71
    %v73 = vpop.xlane.xlu0 %72
    %v74 = vadd.f32 %v54, %v55
    %75 = vadd.xlane.f32.xlu0 %v74
    %v76 = vpop.xlane.xlu0 %75
    %v77 = vadd.f32 %v56, %v57
    %78 = vadd.xlane.f32.xlu0 %v77
    %v79 = vpop.xlane.xlu0 %78
    %v80 = vadd.f32 %v58, %v59
    %81 = vadd.xlane.f32.xlu0 %v80
    %v82 = vpop.xlane.xlu0 %81
    %v83 = vadd.f32 %v60, %v61
    %84 = vadd.xlane.f32.xlu0 %v83
    %v85 = vpop.xlane.xlu0 %84
    %v86 = vadd.f32 %v62, %v63
    %87 = vadd.xlane.f32.xlu0 %v86
    %v88 = vpop.xlane.xlu0 %87
    %v97 = vlaneseq
    %v98 = vand.u32 %v97, 127
    %v99 = vlaneseq
    %v100 = vshrl.u32 %v99, 7
    %v101 = vsub.s32 %v98, %v100
    %v102 = vrot.slane %v67, %v101
    %v103 = vadd.s32 %v98, 4294967288
    %v104 = vlaneseq
    %v105 = vshrl.u32 %v104, 7
    %v106 = vsub.s32 %v103, %v105
    %v107 = vrot.slane %v70, %v106
    %vm108 = vcmask 130112
    %v109 = vsel %vm108, %v107, %v102
    %v110 = vadd.s32 %v98, 4294967280
    %v111 = vlaneseq
    %v112 = vshrl.u32 %v111, 7
    %v113 = vsub.s32 %v110, %v112
    %v114 = vrot.slane %v73, %v113
    %vm115 = vcmask 195712
    %v116 = vsel %vm115, %v114, %v109
    %v117 = vadd.s32 %v98, 4294967272
    %v118 = vlaneseq
    %v119 = vshrl.u32 %v118, 7
    %v120 = vsub.s32 %v117, %v119
    %v121 = vrot.slane %v76, %v120
    %vm122 = vcmask 261312
    %v123 = vsel %vm122, %v121, %v116
    %v124 = vlaneseq
    %v125 = vshrl.u32 %v124, 7
    %v126 = vsub.s32 %v98, %v125
    %v127 = vrot.slane %v79, %v126
    %v128 = vlaneseq
    %v129 = vshrl.u32 %v128, 7
    %v130 = vsub.s32 %v103, %v129
    %v131 = vrot.slane %v82, %v130
    %v132 = vsel %vm108, %v131, %v127
    %v133 = vlaneseq
    %v134 = vshrl.u32 %v133, 7
    %v135 = vsub.s32 %v110, %v134
    %v136 = vrot.slane %v85, %v135
    %v137 = vsel %vm115, %v136, %v132
    %v138 = vlaneseq
    %v139 = vshrl.u32 %v138, 7
    %v140 = vsub.s32 %v117, %v139
    %v141 = vrot.slane %v88, %v140
    %v142 = vsel %vm122, %v141, %v137
    %vm143 = vcmask 1041409
    %v144 = vsel %vm143, %v142, %v123
    %v146 = vadd.f32 %v64, %v144
    %vm147 = vcmask 254976
    %148 = vst.msk [vmem:[#allocation2] sm:$0x3] %vm147, %v146
    %v149 = vld [vmem:[#allocation3] sm:$0x3]
    %v150 = vmax.f32 %v48, %v49
    %151 = vmax.xlane.f32.xlu0 %v150
    %v152 = vpop.xlane.xlu0 %151
    %v153 = vmax.f32 %v50, %v51
    %154 = vmax.xlane.f32.xlu0 %v153
    %v155 = vpop.xlane.xlu0 %154
    %v156 = vmax.f32 %v52, %v53
    %157 = vmax.xlane.f32.xlu0 %v156
    %v158 = vpop.xlane.xlu0 %157
    %v159 = vmax.f32 %v54, %v55
    %160 = vmax.xlane.f32.xlu0 %v159
    %v161 = vpop.xlane.xlu0 %160
    %v162 = vmax.f32 %v56, %v57
    %163 = vmax.xlane.f32.xlu0 %v162
    %v164 = vpop.xlane.xlu0 %163
    %v165 = vmax.f32 %v58, %v59
    %166 = vmax.xlane.f32.xlu0 %v165
    %v167 = vpop.xlane.xlu0 %166
    %v168 = vmax.f32 %v60, %v61
    %169 = vmax.xlane.f32.xlu0 %v168
    %v170 = vpop.xlane.xlu0 %169
    %v171 = vmax.f32 %v62, %v63
    %172 = vmax.xlane.f32.xlu0 %v171
    %v173 = vpop.xlane.xlu0 %172
    %v182 = vlaneseq
    %v183 = vshrl.u32 %v182, 7
    %v184 = vsub.s32 %v98, %v183
    %v185 = vrot.slane %v152, %v184
    %v186 = vlaneseq
    %v187 = vshrl.u32 %v186, 7
    %v188 = vsub.s32 %v103, %v187
    %v189 = vrot.slane %v155, %v188
    %v190 = vsel %vm108, %v189, %v185
    %v191 = vlaneseq
    %v192 = vshrl.u32 %v191, 7
    %v193 = vsub.s32 %v110, %v192
    %v194 = vrot.slane %v158, %v193
    %v195 = vsel %vm115, %v194, %v190
    %v196 = vlaneseq
    %v197 = vshrl.u32 %v196, 7
    %v198 = vsub.s32 %v117, %v197
    %v199 = vrot.slane %v161, %v198
    %v200 = vsel %vm122, %v199, %v195
    %v201 = vlaneseq
    %v202 = vshrl.u32 %v201, 7
    %v203 = vsub.s32 %v98, %v202
    %v204 = vrot.slane %v164, %v203
    %v205 = vlaneseq
    %v206 = vshrl.u32 %v205, 7
    %v207 = vsub.s32 %v103, %v206
    %v208 = vrot.slane %v167, %v207
    %v209 = vsel %vm108, %v208, %v204
    %v210 = vlaneseq
    %v211 = vshrl.u32 %v210, 7
    %v212 = vsub.s32 %v110, %v211
    %v213 = vrot.slane %v170, %v212
    %v214 = vsel %vm115, %v213, %v209
    %v215 = vlaneseq
    %v216 = vshrl.u32 %v215, 7
    %v217 = vsub.s32 %v117, %v216
    %v218 = vrot.slane %v173, %v217
    %v219 = vsel %vm122, %v218, %v214
    %v220 = vsel %vm143, %v219, %v200
    %v222 = vmax.f32 %v149, %v220
    %223 = vst.msk [vmem:[#allocation3] sm:$0x3] %vm147, %v222
    // Predicated region
    $region26: #{tpu_custom_call.1} parent=1 // pred_check
      %p224 = pneg %p41
    $region27: #{tpu_custom_call.1} parent=1 // pred_check_branch
      %226 = sbr.rel (%p224) target = $region29
    $region28: #{tpu_custom_call.1} parent=1 // pred_region
      %v227 = vld [vmem:[#allocation7] sm:$0x3]
      %v228 = vld [vmem:[%s2] sm:$0x3]
      %v229 = vld [vmem:[#allocation2] sm:$0x3]
      %v230 = vmul.f32 %v229, 0.00390625
      %v231 = vld [vmem:[#allocation3] sm:$0x3]
      %v232 = vlaneseq
      %v233 = vshrl.u32 %v232, 7
      %v234 = vsub.s32 0, %v233
      %v235 = vrot.slane %v227, %v234
      %v236 = vmul.f32 %v230, %v235
      %v237 = vsel %vm147, %v236, 0.0
      %238 = vadd.xlane.f32.xlu0 %v237
      %v239 = vpop.xlane.xlu0 %238
      %v240 = vmax.f32 %v239, 0.0
      %v241 = vlaneseq
      %v242 = vshrl.u32 %v241, 7
      %v243 = vsub.s32 0, %v242
      %v244 = vrot.slane %v228, %v243
      %v245 = vmul.f32 %v240, %v244
      %v246 = vadd.f32 %v245, 0.0
      %v247 = vlaneseq
      %v248 = vshrl.u32 %v247, 7
      %v249 = vsub.s32 1, %v248
      %v250 = vrot.slane %v227, %v249
      %v251 = vmul.f32 %v230, %v250
      %v252 = vsel %vm147, %v251, 0.0
      %253 = vadd.xlane.f32.xlu0 %v252
      %v254 = vpop.xlane.xlu0 %253
      %v255 = vmax.f32 %v254, 0.0
      %v256 = vlaneseq
      %v257 = vshrl.u32 %v256, 7
      %v258 = vsub.s32 1, %v257
      %v259 = vrot.slane %v228, %v258
      %v260 = vmul.f32 %v255, %v259
      %v261 = vadd.f32 %v246, %v260
      %v262 = vmul.f32 %v231, %v235
      %v263 = vsel %vm147, %v262, 0.0
      %264 = vadd.xlane.f32.xlu0 %v263
      %v265 = vpop.xlane.xlu0 %264
      %v266 = vmax.f32 %v265, 0.0
      %v267 = vmul.f32 %v266, %v244
      %v268 = vadd.f32 %v267, 0.0
      %v269 = vmul.f32 %v231, %v250
      %v270 = vsel %vm147, %v269, 0.0
      %271 = vadd.xlane.f32.xlu0 %v270
      %v272 = vpop.xlane.xlu0 %271
      %v273 = vmax.f32 %v272, 0.0
      %v274 = vmul.f32 %v273, %v259
      %v275 = vadd.f32 %v268, %v274
      %v276 = vadd.f32 %v261, %v275
      %v277 = vxor.u32 %v276, 2147483648
      %v278 = vmul.f32 %v277, 1.442695
      %v279 = vpow.pop %v278
      %v280 = vadd.f32 %v279, 1.0
      %v281 = vrcp.pop %v280
      %v282 = vmul.f32 1.0, %v281
      %v285 = vunpack.c.l.s4 1966171168
      %v286 = vunpack.c.0.s8 %v285
      %v287 = vlaneseq
      %v288 = vshrl.u32 %v287, 7
      %v289 = vsub.s32 %v286, %v288
      %v290 = vrot.slane %v282, %v289
      %v291 = vcombine.high %v290, %v290
      %v293 = vunpack.c.l.s4 1966171168
      %v294 = vunpack.c.0.s8 %v293
      %v295 = vlaneseq
      %v296 = vshrl.u32 %v295, 7
      %v297 = vsub.s32 %v294, %v296
      %v298 = vrot.slane %v290, %v297
      %v300 = vunpack.c.l.s4 1966171168
      %v301 = vunpack.c.0.s8 %v300
      %v302 = vlaneseq
      %v303 = vshrl.u32 %v302, 7
      %v304 = vsub.s32 %v301, %v303
      %v305 = vrot.slane %v291, %v304
      %vm308 = vcmask 253952
      %309 = vst.msk [vmem:[#allocation9] sm:$0x1] %vm308, %v298
      %310 = vst.msk [vmem:[#allocation9 + $0x1] sm:$0x1] %vm308, %v305
    $region29: #{tpu_custom_call.1} parent=1 // pred_fallthru
      _
    // Predicated region
    $region30: #{tpu_custom_call.1} parent=1 // pred_check
      _
    $region31: #{tpu_custom_call.1} parent=1 // pred_check_branch
      %312 = sbr.rel (0) target = $region33
    $region32: #{tpu_custom_call.1} parent=1 // pred_region
      %s314 = ssub.s32 32, 32
      %315 = vsyncadd [#allocation6], %s314
      %s316 = sshll.u32 [#allocation9], 4
      %s317 = int_to_ptr.vmem [resolvable:$true] %s316
      %322 = dma.vmem_to_hbm [thread:$0]  %s317, 32, %s3, [#allocation6], 16, 16, 1
    $region33: #{tpu_custom_call.1} parent=1 // pred_fallthru
      _
    // Predicated region
    $region34: #{tpu_custom_call.1} parent=1 // pred_check
      _
    $region35: #{tpu_custom_call.1} parent=1 // pred_check_branch
      %324 = sbr.rel (0) target = $region37
    $region36: #{tpu_custom_call.1} parent=1 // pred_region
      %325 = dma.done [#allocation6], 32
    $region37: #{tpu_custom_call.1} parent=1 // pred_fallthru
      _
    %326 = vsyncpa [#allocation5], 1
    %327 = vsyncpa [#allocation8], 1
    %328 = vsyncpa [#allocation6], 1

</llo_original>
